<compile_context>
chip_gen: v5e
topology: v5e:2x2
jax: 0.10.0
libtpu: 0.0.40
codegen_flags: <defaults>
</compile_context>

<pallas_src>
import jax
import jax.numpy as jnp
from jax.experimental import pallas as pl
from jax.experimental.pallas import tpu as pltpu


def _round_up(x, m):
    return ((x + m - 1) // m) * m


# ---------------------------------------------------------------------------
# Fast path: whole problem in a single full-extent block (no padding, no loop)
# ---------------------------------------------------------------------------
def _linear_single_block_kernel(x_ref, w_ref, o_ref):
    # x_ref: (B, I);  w_ref: (I, O)  -> canonical (K, N) MXU rhs layout.
    o_ref[...] = jnp.dot(
        x_ref[...], w_ref[...], preferred_element_type=jnp.float32
    ).astype(o_ref.dtype)


# ---------------------------------------------------------------------------
# Tiled path: (M, N, K) grid, f32 VMEM accumulator, K innermost (reduction)
# ---------------------------------------------------------------------------
def _linear_tiled_kernel(x_ref, w_ref, o_ref, acc_ref):
    @pl.when(pl.program_id(2) == 0)
    def _():
        acc_ref[...] = jnp.zeros_like(acc_ref)

    acc_ref[...] += jnp.dot(
        x_ref[...], w_ref[...], preferred_element_type=jnp.float32
    )

    @pl.when(pl.program_id(2) == pl.num_programs(2) - 1)
    def _():
        o_ref[...] = acc_ref[...].astype(o_ref.dtype)


def _pick_tile(dim, candidates, align):
    """Largest candidate whose padding waste is <= 12.5%; else the smallest."""
    ceil_dim = _round_up(dim, align)
    cands = [c for c in candidates if c <= ceil_dim]
    if not cands:
        return ceil_dim
    for c in cands:  # candidates are in descending order
        padded = _round_up(dim, c)
        if 8 * (padded - dim) <= padded:
            return c
    return cands[-1]


def linear_no_bias(x, weight):
    """y = x @ weight.T ;  x: (B, I), weight: (O, I) in torch layout."""
    B, I = x.shape
    O, I2 = weight.shape
    assert I == I2, "in_features mismatch"

    # Static Linear weight: present it once in K-major (I, O) layout so the
    # MXU rhs is (K, N) with N lane-dense (no per-tile XLU transpose).  In a
    # real model this is done once at weight-load time and cached.
    w_km = weight.T  # (I, O)

    itemsize = jnp.dtype(x.dtype).itemsize

    # ---------------- Fast path: single full-extent block -------------------
    if B <= 256 and O <= 256 and I <= 1024:
        return pl.pallas_call(
            _linear_single_block_kernel,
            out_shape=jax.ShapeDtypeStruct((B, O), x.dtype),
            grid_spec=pltpu.PrefetchScalarGridSpec(
                num_scalar_prefetch=0,
                grid=(1,),
                in_specs=[
                    pl.BlockSpec((B, I), lambda i: (0, 0)),
                    pl.BlockSpec((I, O), lambda i: (0, 0)),
                ],
                out_specs=pl.BlockSpec((B, O), lambda i: (0, 0)),
            ),
            compiler_params=pltpu.CompilerParams(
                dimension_semantics=("arbitrary",),
            ),
            cost_estimate=pl.CostEstimate(
                flops=2 * B * I * O,
                transcendentals=0,
                bytes_accessed=itemsize * (B * I + I * O + B * O),
            ),
        )(x, w_km)

    # ---------------- Tiled path --------------------------------------------
    tm = _pick_tile(B, (512, 256, 128), 8)
    tn = _pick_tile(O, (512, 256, 128), 128)
    tk = _pick_tile(I, (2048, 1024, 512, 256, 128), 128)

    Mp, Np, Kp = _round_up(B, tm), _round_up(O, tn), _round_up(I, tk)

    # v7x has 2 TensorCores: make sure the "parallel" (M, N) sub-grid has at
    # least 2 programs so both cores get work.
    if (Mp // tm) * (Np // tn) < 2:
        if tn >= 256:
            tn //= 2
        elif tm >= 16:
            tm = max(8, _round_up(tm // 2, 8))
        Mp, Np = _round_up(B, tm), _round_up(O, tn)

    xp = x if (Mp == B and Kp == I) else jnp.pad(x, ((0, Mp - B), (0, Kp - I)))
    wp = w_km if (Kp == I and Np == O) else jnp.pad(
        w_km, ((0, Kp - I), (0, Np - O)))

    grid = (Mp // tm, Np // tn, Kp // tk)

    # VMEM budget: double-buffered x/W/out tiles + f32 accumulator + headroom.
    # With tile caps (512, 512, 2048) this stays ~19-24 MiB -> fits v7x's
    # 64 MiB/TC and v5e's 128 MiB physical (explicit limit overrides the
    # 16/32 MiB default scoped limit).
    vmem_bytes = 2 * itemsize * (tm * tk + tk * tn + tm * tn) + 4 * tm * tn
    vmem_limit = min(max(vmem_bytes + (4 << 20), 32 << 20), 48 << 20)

    out = pl.pallas_call(
        _linear_tiled_kernel,
        out_shape=jax.ShapeDtypeStruct((Mp, Np), x.dtype),
        grid_spec=pltpu.PrefetchScalarGridSpec(
            num_scalar_prefetch=0,
            grid=grid,
            in_specs=[
                pl.BlockSpec((tm, tk), lambda i, j, k: (i, k)),  # x tile (M,K)
                pl.BlockSpec((tk, tn), lambda i, j, k: (k, j)),  # W tile (K,N)
            ],
            out_specs=pl.BlockSpec((tm, tn), lambda i, j, k: (i, j)),
            scratch_shapes=[pltpu.VMEM((tm, tn), jnp.float32)],
        ),
        compiler_params=pltpu.CompilerParams(
            dimension_semantics=("parallel", "parallel", "arbitrary"),
            vmem_limit_bytes=vmem_limit,
        ),
        cost_estimate=pl.CostEstimate(
            flops=2 * Mp * Kp * Np,
            transcendentals=0,
            # Actual HBM traffic, including refetch factors across M/N blocks.
            bytes_accessed=itemsize * (
                (Np // tn) * Mp * Kp       # x fetched once per N block
                + (Mp // tm) * Kp * Np     # W fetched once per M block
                + Mp * Np),                # output written once
        ),
    )(xp, wp)

    if (Mp, Np) != (B, O):
        out = out[:B, :O]
    return out


if __name__ == "__main__":
    key = jax.random.PRNGKey(0)
    kx, kw = jax.random.split(key)

    batch = 8
    in_features = 32
    out_features = 16

    x = jax.random.normal(kx, (batch, in_features), dtype=jnp.float32)
    # Deterministic "weights" the module copies into nn.Linear (O, I) layout.
    weight = jax.random.normal(kw, (out_features, in_features), dtype=jnp.float32)

    y = linear_no_bias(x, weight)
    jax.block_until_ready(y)

    # Reference: same as torch's bias-free Linear, x @ W.T
    y_ref = x @ weight.T
    assert y.shape == (batch, out_features)
    assert jnp.allclose(y, y_ref, atol=1e-5, rtol=1e-5)

    print("KERNEL_OK")
</pallas_src>

<mosaic_0001>
module attributes {stable_mosaic.version = 11 : i64} {
  func.func @_linear_single_block_kernel(%arg0: i32, %arg1: memref<8x32xf32, #tpu.memory_space<vmem>>, %arg2: memref<32x16xf32, #tpu.memory_space<vmem>>, %arg3: memref<8x16xf32, #tpu.memory_space<vmem>>) attributes {dimension_semantics = [#tpu.dimension_semantics<arbitrary>], iteration_bounds = array<i64: 1>, scalar_prefetch = 0 : i64, scratch_operands = 0 : i64, tpu.core_type = #tpu.core_type<tc>, window_params = [{pipeline_mode = #tpu.pipeline_mode<synchronous>, transform_indices = @transform_0, window_bounds = array<i64: 8, 32>}, {pipeline_mode = #tpu.pipeline_mode<synchronous>, transform_indices = @transform_1, window_bounds = array<i64: 32, 16>}, {pipeline_mode = #tpu.pipeline_mode<synchronous>, transform_indices = @transform_2, window_bounds = array<i64: 8, 16>}]} {
    %c0 = arith.constant 0 : index
    %c0_0 = arith.constant 0 : index
    %0 = vector.load %arg1[%c0, %c0_0] : memref<8x32xf32, #tpu.memory_space<vmem>>, vector<8x32xf32>
    %c0_1 = arith.constant 0 : index
    %c0_2 = arith.constant 0 : index
    %1 = vector.load %arg2[%c0_1, %c0_2] : memref<32x16xf32, #tpu.memory_space<vmem>>, vector<32x16xf32>
    %cst = arith.constant dense<0.000000e+00> : vector<8x16xf32>
    %2 = tpu.matmul %0, %1, %cst {dimension_numbers = #tpu.dot_dimension_numbers<[1], [0], [0], [1], [0, 0, 1, 1], [], []>} : vector<8x32xf32>, vector<32x16xf32>, vector<8x16xf32> -> vector<8x16xf32>
    %c0_3 = arith.constant 0 : index
    %c0_4 = arith.constant 0 : index
    %3 = vector.load %arg3[%c0_3, %c0_4] : memref<8x16xf32, #tpu.memory_space<vmem>>, vector<8x16xf32>
    tpu.vector_store %arg3[%c0_3, %c0_4], %2 {strides = array<i32>} : memref<8x16xf32, #tpu.memory_space<vmem>>, vector<8x16xf32>,
    return
  }
  func.func @transform_0(%arg0: i32) -> (i32, i32) {
    %c0_i32 = arith.constant 0 : i32
    %c0_i32_0 = arith.constant 0 : i32
    %c0_i32_1 = arith.constant 0 : i32
    return %c0_i32, %c0_i32_0 : i32, i32
  }
  func.func @transform_1(%arg0: i32) -> (i32, i32) {
    %c0_i32 = arith.constant 0 : i32
    %c0_i32_0 = arith.constant 0 : i32
    %c0_i32_1 = arith.constant 0 : i32
    return %c0_i32, %c0_i32_0 : i32, i32
  }
  func.func @transform_2(%arg0: i32) -> (i32, i32) {
    %c0_i32 = arith.constant 0 : i32
    %c0_i32_0 = arith.constant 0 : i32
    %c0_i32_1 = arith.constant 0 : i32
    return %c0_i32, %c0_i32_0 : i32, i32
  }
}

</mosaic_0001>

<llo_original>
// kernel: tpu_custom_call.1
$region0: #{tpu_custom_call.1}
  #allocation0 [shape = 'u32[]', space=smem, size = 0x4, offset = 0x4, fixed_abs, tag = 'smem constant byte address 0x4 - core index']
  #allocation1 [shape = 'u32[72,128]{1,0:T(1,128)}', space=vmem, size = 0x9000, scoped, tag = 'internal scratch']
  %s0 = inlined_call_operand.vmem [shape: f32[8,32], index: 0, kind: input, shape index: {}]
  %s1 = inlined_call_operand.vmem [shape: f32[32,16], index: 1, kind: input, shape index: {}]
  %s2 = inlined_call_operand.hbm [shape: f32[8,16], index: 2, kind: output, shape index: {}]
  %s3 = sld [smem:[#allocation0]]
  $region18: #{tpu_custom_call.1} parent=0
    _
  %s5 = ssub.s32 1, %s3
  %s6 = scalar_select 0, %s5, %s3
  $region1: #{tpu_custom_call.1} parent=0
    #allocation2 [shape = 'u8[4096]{0}', space=vmem, size = 0x1000, scoped, tag = 'output window, operand 0, single buffered']
    #allocation3 [shape = 's32[1]{0}', space=sflag, size = 0x4, scoped, tag = 'scoped memory for tpu_custom_call.1']
    %7 = vsyncpa [#allocation3], 0
    // Predicated region
    $region2: #{tpu_custom_call.1} parent=1 // pred_check
      _
    $region3: #{tpu_custom_call.1} parent=1 // pred_check_branch
      %9 = sbr.rel (0) target = $region5
    $region4: #{tpu_custom_call.1} parent=1 // pred_region
      _
    $region5: #{tpu_custom_call.1} parent=1 // pred_fallthru
      _
    // Predicated region
    $region6: #{tpu_custom_call.1} parent=1 // pred_check
      _
    $region7: #{tpu_custom_call.1} parent=1 // pred_check_branch
      %11 = sbr.rel (0) target = $region9
    $region8: #{tpu_custom_call.1} parent=1 // pred_region
      _
    $region9: #{tpu_custom_call.1} parent=1 // pred_fallthru
      _
    %v12 = vld [vmem:[%s0] sm:$0xff]
    %v13 = vld [vmem:[%s1] sm:$0xff]
    %v14 = vld [vmem:[%s1 + $0x8] sm:$0xff]
    %v15 = vld [vmem:[%s1 + $0x10] sm:$0xff]
    %v16 = vld [vmem:[%s1 + $0x18] sm:$0xff]
    %vm17 = vcmask 261120
    %v19 = vsel %vm17, %v12, 0
    %21 = vmatpush.msra.mxu0 0.0
    %22 = vmatpush.msra.mxu0 0.0
    %23 = vmatpush.msra.mxu0 0.0
    %24 = vmatpush.msra.mxu0 0.0
    %25 = vmatpush.msra.mxu0 0.0
    %26 = vmatpush.msra.mxu0 0.0
    %27 = vmatpush.msra.mxu0 0.0
    %28 = vmatpush.msra.mxu0 0.0
    %29 = vmatpush.msra.mxu0 0.0
    %30 = vmatpush.msra.mxu0 0.0
    %31 = vmatpush.msra.mxu0 0.0
    %32 = vmatpush.msra.mxu0 0.0
    %33 = vmatpush.msra.mxu0 %v16
    %34 = vmatpush.msra.mxu0 %v15
    %35 = vmatpush.msra.mxu0 %v14
    %36 = vmatpush.msra.mxu0 %v13
    %37 = vmatmul.f32.gmra.mxu0 %v19
    %v38 = vpop.f32.mrf.mxu0
    %v39 = vadd.f32 0.0, %v38
    %40 = vdwg.mxu0
    %vm41 = vcmask 130048
    %42 = vst.msk [vmem:[#allocation2] sm:$0xff] %vm41, %v39
    // Predicated region
    $region10: #{tpu_custom_call.1} parent=1 // pred_check
      _
    $region11: #{tpu_custom_call.1} parent=1 // pred_check_branch
      %44 = sbr.rel (0) target = $region13
    $region12: #{tpu_custom_call.1} parent=1 // pred_region
      %46 = vsyncadd [#allocation3], 0
      %s48 = sshll.u32 [#allocation2], 4
      %s49 = int_to_ptr.vmem [resolvable:$true] %s48
      %s50 = sshll.u32 %s2, 4
      %s51 = int_to_ptr.hbm [resolvable:$true] %s50
      %53 = dma.vmem_to_hbm [thread:$0]  %s49, 128, %s51, [#allocation3]
    $region13: #{tpu_custom_call.1} parent=1 // pred_fallthru
      _
    // Predicated region
    $region14: #{tpu_custom_call.1} parent=1 // pred_check
      _
    $region15: #{tpu_custom_call.1} parent=1 // pred_check_branch
      %55 = sbr.rel (0) target = $region17
    $region16: #{tpu_custom_call.1} parent=1 // pred_region
      %57 = dma.done [#allocation3], 128
    $region17: #{tpu_custom_call.1} parent=1 // pred_fallthru
      _
    %58 = vsyncpa [#allocation3], 1

</llo_original>
